<compile_context>
chip_gen: v7x
topology: tpu7x:2x2x1
jax: 0.10.0
libtpu: 0.0.40
codegen_flags: <defaults>
</compile_context>

<pallas_src>
import functools

import jax
import jax.numpy as jnp
from jax.experimental import pallas as pl
from jax.experimental.pallas import tpu as pltpu


# ------------------------------------------------------------------
# Pallas kernel: KxK conv (stride 1, "same" zero padding) + folded BN + ReLU
# ------------------------------------------------------------------

def _conv_bn_relu_kernel(x_ref, w_ref, scale_ref, shift_ref, o_ref, *,
                         H, W, KH, KW, pad, apply_relu):
    """x_ref: (L, Cin) H-padded, flattened image (bf16).
       w_ref: (KH, KW, Cin, Cout) (bf16).  scale/shift: (1, Cout) f32.
       o_ref: (H*W, Cout).
    For every tap (kh, kw) the shifted window is the plain slice
    x_ref[kh*W + kw : kh*W + kw + H*W, :]; rows whose source column (w + kw - pad)
    falls outside [0, W) are masked to zero (that is the conv's zero padding along W;
    the zero padding along H is already baked into x_ref)."""
    HW = H * W
    cout = o_ref.shape[-1]
    acc = jnp.zeros((HW, cout), jnp.float32)
    if KW > 1:
        col = jax.lax.broadcasted_iota(jnp.int32, (HW, 1), 0) % W
    for kh in range(KH):
        for kw in range(KW):
            slab = x_ref[pl.ds(kh * W + kw, HW), :]
            dw = kw - pad
            if dw != 0:
                valid = jnp.logical_and(col + dw >= 0, col + dw < W)
                slab = jnp.where(valid, slab, jnp.zeros_like(slab))
            acc = acc + jnp.dot(slab, w_ref[kh, kw],
                                preferred_element_type=jnp.float32)
    y = acc * scale_ref[...] + shift_ref[...]
    if apply_relu:
        y = jnp.maximum(y, 0.0)
    o_ref[...] = y.astype(o_ref.dtype)


def conv_bn_relu(x, w, scale, shift, *, pad, apply_relu=True,
                 out_dtype=jnp.bfloat16):
    """Fused conv2d(stride=1, padding=pad) + eval-BatchNorm affine + ReLU.

    x: (N, H, W, Cin) NHWC.  w: (KH, KW, Cin, Cout) HWIO.  scale/shift: (1, Cout).
    Returns (N, H, W, Cout).
    """
    N, H, W, Cin = x.shape
    KH, KW, Cin2, Cout = w.shape
    assert Cin == Cin2 and KH == 2 * pad + 1 and KW == 2 * pad + 1
    HW = H * W

    if pad > 0:
        # Zero-pad H by `pad` rows top/bottom, flatten spatial, then pad the
        # flattened axis by `pad` so every tap's window is a contiguous slice.
        xp = jnp.pad(x, ((0, 0), (pad, pad), (0, 0), (0, 0)))
        xf = xp.reshape(N, (H + 2 * pad) * W, Cin)
        xf = jnp.pad(xf, ((0, 0), (pad, pad), (0, 0)))
    else:
        xf = x.reshape(N, HW, Cin)
    L = xf.shape[1]

    xf = xf.astype(jnp.bfloat16)          # bf16 feeds the MXU and halves DMA bytes
    w = w.astype(jnp.bfloat16)
    scale = scale.astype(jnp.float32)     # epilogue stays f32 (v5e-friendly)
    shift = shift.astype(jnp.float32)

    kernel = functools.partial(_conv_bn_relu_kernel, H=H, W=W, KH=KH, KW=KW,
                               pad=pad, apply_relu=apply_relu)
    out = pl.pallas_call(
        kernel,
        out_shape=jax.ShapeDtypeStruct((N, HW, Cout), out_dtype),
        grid=(N,),
        in_specs=[
            pl.BlockSpec((None, L, Cin), lambda n: (n, 0, 0)),
            pl.BlockSpec((KH, KW, Cin, Cout), lambda n: (0, 0, 0, 0)),
            pl.BlockSpec((1, Cout), lambda n: (0, 0)),
            pl.BlockSpec((1, Cout), lambda n: (0, 0)),
        ],
        out_specs=pl.BlockSpec((None, HW, Cout), lambda n: (n, 0, 0)),
        compiler_params=pltpu.CompilerParams(
            dimension_semantics=("parallel",),          # megacore over batch
            vmem_limit_bytes=48 * 1024 * 1024,          # v7x has 64 MiB/TC
        ),
    )(xf, w, scale, shift)
    return out.reshape(N, H, W, Cout)


# ------------------------------------------------------------------
# Parameters (deterministic, synthetic; BN folded in eval mode, eps=1e-3)
# ------------------------------------------------------------------

def _fold_bn(key, channels, eps=1e-3):
    kg, kb, km, kv = jax.random.split(key, 4)
    gamma = 1.0 + 0.1 * jax.random.normal(kg, (channels,), jnp.float32)
    beta = 0.1 * jax.random.normal(kb, (channels,), jnp.float32)
    rmean = 0.1 * jax.random.normal(km, (channels,), jnp.float32)
    rvar = 1.0 + 0.1 * jnp.abs(jax.random.normal(kv, (channels,), jnp.float32))
    scale = gamma / jnp.sqrt(rvar + eps)
    shift = beta - rmean * scale
    return scale.reshape(1, channels), shift.reshape(1, channels)


def _conv_params(key, kh, kw, cin, cout):
    k_w, k_bn = jax.random.split(key)
    fan_in = kh * kw * cin
    w = jax.random.normal(k_w, (kh, kw, cin, cout), jnp.float32) / jnp.sqrt(fan_in)
    s, b = _fold_bn(k_bn, cout)
    return {"w": w, "scale": s, "shift": b}


def init_params(key, in_channels, pool_features):
    keys = jax.random.split(key, 7)
    return {
        "b1x1":   _conv_params(keys[0], 1, 1, in_channels, 64),
        "b5x5_1": _conv_params(keys[1], 1, 1, in_channels, 48),
        "b5x5_2": _conv_params(keys[2], 5, 5, 48, 64),
        "b3x3_1": _conv_params(keys[3], 1, 1, in_channels, 64),
        "b3x3_2": _conv_params(keys[4], 3, 3, 64, 96),
        "b3x3_3": _conv_params(keys[5], 3, 3, 96, 96),
        "bpool":  _conv_params(keys[6], 1, 1, in_channels, pool_features),
    }


# ------------------------------------------------------------------
# Forward (InceptionA)
# ------------------------------------------------------------------

def inception_a_forward(x_nchw, params):
    x = jnp.transpose(x_nchw, (0, 2, 3, 1))            # NCHW -> NHWC (glue)

    # branch1x1: 1x1 conv + BN + ReLU
    p = params["b1x1"]
    b1 = conv_bn_relu(x, p["w"], p["scale"], p["shift"], pad=0,
                      out_dtype=jnp.float32)

    # branch5x5: 1x1 -> 5x5 (pad 2)
    p = params["b5x5_1"]
    b5 = conv_bn_relu(x, p["w"], p["scale"], p["shift"], pad=0)
    p = params["b5x5_2"]
    b5 = conv_bn_relu(b5, p["w"], p["scale"], p["shift"], pad=2,
                      out_dtype=jnp.float32)

    # branch3x3dbl: 1x1 -> 3x3 (pad 1) -> 3x3 (pad 1)
    p = params["b3x3_1"]
    b3 = conv_bn_relu(x, p["w"], p["scale"], p["shift"], pad=0)
    p = params["b3x3_2"]
    b3 = conv_bn_relu(b3, p["w"], p["scale"], p["shift"], pad=1)
    p = params["b3x3_3"]
    b3 = conv_bn_relu(b3, p["w"], p["scale"], p["shift"], pad=1,
                      out_dtype=jnp.float32)

    # branch_pool: avg_pool2d(k=3, s=1, p=1, count_include_pad=True) -> 1x1 conv.
    # The average pool commutes with the 1x1 conv, so the whole branch is exactly a
    # 3x3 conv whose 9 taps are all (w_1x1 / 9) -> single fused kernel, no pooled
    # intermediate in HBM.
    p = params["bpool"]
    w_eff = jnp.broadcast_to(p["w"][0, 0] / 9.0, (3, 3) + p["w"].shape[2:])
    bp = conv_bn_relu(x, w_eff, p["scale"], p["shift"], pad=1,
                      out_dtype=jnp.float32)

    out = jnp.concatenate([b1, b5, b3, bp], axis=-1)    # == torch.cat(outputs, dim=1)
    return jnp.transpose(out, (0, 3, 1, 2))             # NHWC -> NCHW


# ------------------------------------------------------------------

if __name__ == "__main__":
    key = jax.random.PRNGKey(0)
    kx, kp = jax.random.split(key)

    N, Cin, H, W = 2, 4, 16, 16
    pool_features = 32

    x = jax.random.normal(kx, (N, Cin, H, W), jnp.float32)
    params = init_params(kp, Cin, pool_features)

    out = jax.block_until_ready(inception_a_forward(x, params))
    assert out.shape == (N, 64 + 64 + 96 + pool_features, H, W), out.shape
    assert bool(jnp.all(jnp.isfinite(out)))
    print("KERNEL_OK")
</pallas_src>

<mosaic_0001>
module attributes {stable_mosaic.version = 11 : i64} {
  func.func @_conv_bn_relu_kernel(%arg0: i32, %arg1: memref<1x256x4xbf16, #tpu.memory_space<vmem>>, %arg2: memref<1x1x4x64xbf16, #tpu.memory_space<vmem>>, %arg3: memref<1x64xf32, #tpu.memory_space<vmem>>, %arg4: memref<1x64xf32, #tpu.memory_space<vmem>>, %arg5: memref<1x256x64xf32, #tpu.memory_space<vmem>>) attributes {dimension_semantics = [#tpu.dimension_semantics<parallel>], iteration_bounds = array<i64: 2>, scalar_prefetch = 0 : i64, scratch_operands = 0 : i64, tpu.core_type = #tpu.core_type<tc>, window_params = [{transform_indices = @transform_0, window_bounds = array<i64: 1, 256, 4>}, {pipeline_mode = #tpu.pipeline_mode<synchronous>, transform_indices = @transform_1, window_bounds = array<i64: 1, 1, 4, 64>}, {pipeline_mode = #tpu.pipeline_mode<synchronous>, transform_indices = @transform_2, window_bounds = array<i64: 1, 64>}, {pipeline_mode = #tpu.pipeline_mode<synchronous>, transform_indices = @transform_3, window_bounds = array<i64: 1, 64>}, {transform_indices = @transform_4, window_bounds = array<i64: 1, 256, 64>}]} {
    %cst = arith.constant 0.000000e+00 : f32
    %0 = vector.broadcast %cst : f32 to vector<256x64xf32>
    %c0 = arith.constant 0 : index
    %c0_0 = arith.constant 0 : index
    %c0_1 = arith.constant 0 : index
    %1 = vector.load %arg1[%c0, %c0_0, %c0_1] : memref<1x256x4xbf16, #tpu.memory_space<vmem>>, vector<1x256x4xbf16>
    %2 = vector.shape_cast %1 : vector<1x256x4xbf16> to vector<256x4xbf16>
    %c0_2 = arith.constant 0 : index
    %c0_3 = arith.constant 0 : index
    %c0_4 = arith.constant 0 : index
    %c0_5 = arith.constant 0 : index
    %3 = vector.load %arg2[%c0_2, %c0_3, %c0_4, %c0_5] : memref<1x1x4x64xbf16, #tpu.memory_space<vmem>>, vector<1x1x4x64xbf16>
    %4 = vector.shape_cast %3 : vector<1x1x4x64xbf16> to vector<4x64xbf16>
    %cst_6 = arith.constant dense<0.000000e+00> : vector<256x64xf32>
    %5 = tpu.matmul %2, %4, %cst_6 {dimension_numbers = #tpu.dot_dimension_numbers<[1], [0], [0], [1], [0, 0, 1, 1], [], []>} : vector<256x4xbf16>, vector<4x64xbf16>, vector<256x64xf32> -> vector<256x64xf32>
    %6 = arith.addf %0, %5 : vector<256x64xf32>
    %c0_7 = arith.constant 0 : index
    %c0_8 = arith.constant 0 : index
    %7 = vector.load %arg3[%c0_7, %c0_8] : memref<1x64xf32, #tpu.memory_space<vmem>>, vector<1x64xf32>
    %8 = vector.broadcast %7 : vector<1x64xf32> to vector<256x64xf32>
    %9 = arith.mulf %6, %8 : vector<256x64xf32>
    %c0_9 = arith.constant 0 : index
    %c0_10 = arith.constant 0 : index
    %10 = vector.load %arg4[%c0_9, %c0_10] : memref<1x64xf32, #tpu.memory_space<vmem>>, vector<1x64xf32>
    %11 = vector.broadcast %10 : vector<1x64xf32> to vector<256x64xf32>
    %12 = arith.addf %9, %11 : vector<256x64xf32>
    %cst_11 = arith.constant 0.000000e+00 : f32
    %13 = vector.broadcast %cst_11 : f32 to vector<256x64xf32>
    %14 = arith.maximumf %12, %13 : vector<256x64xf32>
    %c0_12 = arith.constant 0 : index
    %c0_13 = arith.constant 0 : index
    %c0_14 = arith.constant 0 : index
    %15 = vector.load %arg5[%c0_12, %c0_13, %c0_14] : memref<1x256x64xf32, #tpu.memory_space<vmem>>, vector<1x256x64xf32>
    %16 = vector.shape_cast %15 : vector<1x256x64xf32> to vector<256x64xf32>
    %17 = vector.shape_cast %14 : vector<256x64xf32> to vector<1x256x64xf32>
    tpu.vector_store %arg5[%c0_12, %c0_13, %c0_14], %17 {strides = array<i32>} : memref<1x256x64xf32, #tpu.memory_space<vmem>>, vector<1x256x64xf32>,
    return
  }
  func.func @transform_0(%arg0: i32) -> (i32, i32, i32) {
    %c0_i32 = arith.constant 0 : i32
    %c0_i32_0 = arith.constant 0 : i32
    %c0_i32_1 = arith.constant 0 : i32
    return %arg0, %c0_i32, %c0_i32_0 : i32, i32, i32
  }
  func.func @transform_1(%arg0: i32) -> (i32, i32, i32, i32) {
    %c0_i32 = arith.constant 0 : i32
    %c0_i32_0 = arith.constant 0 : i32
    %c0_i32_1 = arith.constant 0 : i32
    %c0_i32_2 = arith.constant 0 : i32
    %c0_i32_3 = arith.constant 0 : i32
    return %c0_i32, %c0_i32_0, %c0_i32_1, %c0_i32_2 : i32, i32, i32, i32
  }
  func.func @transform_2(%arg0: i32) -> (i32, i32) {
    %c0_i32 = arith.constant 0 : i32
    %c0_i32_0 = arith.constant 0 : i32
    %c0_i32_1 = arith.constant 0 : i32
    return %c0_i32, %c0_i32_0 : i32, i32
  }
  func.func @transform_3(%arg0: i32) -> (i32, i32) {
    %c0_i32 = arith.constant 0 : i32
    %c0_i32_0 = arith.constant 0 : i32
    %c0_i32_1 = arith.constant 0 : i32
    return %c0_i32, %c0_i32_0 : i32, i32
  }
  func.func @transform_4(%arg0: i32) -> (i32, i32, i32) {
    %c0_i32 = arith.constant 0 : i32
    %c0_i32_0 = arith.constant 0 : i32
    %c0_i32_1 = arith.constant 0 : i32
    return %arg0, %c0_i32, %c0_i32_0 : i32, i32, i32
  }
}

</mosaic_0001>

<llo_original>
// kernel: tpu_custom_call.1
$region0: #{tpu_custom_call.1}
  #allocation0 [shape = 'u32[]', space=smem, size = 0x4, offset = 0x4, fixed_abs, tag = 'smem constant byte address 0x4 - core index']
  #allocation1 [shape = 'u32[144,128]{1,0:T(1,128)}', space=vmem, size = 0x12000, scoped, tag = 'internal scratch']
  %s0 = inlined_call_operand.vmem [shape: bf16[2,256,4], index: 0, kind: input, shape index: {}]
  %s1 = inlined_call_operand.vmem [shape: bf16[1,1,4,64], index: 1, kind: input, shape index: {}]
  %s2 = inlined_call_operand.vmem [shape: f32[1,64], index: 2, kind: input, shape index: {}]
  %s3 = inlined_call_operand.vmem [shape: f32[1,64], index: 3, kind: input, shape index: {}]
  %s4 = inlined_call_operand.vmem [shape: f32[2,256,64], index: 4, kind: output, shape index: {}]
  %s5 = sld [smem:[#allocation0]]
  $region49: #{tpu_custom_call.1} parent=0
    _
  %s7 = ssub.s32 1, %s5
  %s8 = scalar_select 0, %s7, %s5
  loop: start=0, step=1, limit=4
  $region2: #{tpu_custom_call.1} parent=0 // loop_pre_header
    _
  $region3: #{tpu_custom_call.1} parent=0 // loop_header
    %s10 = sphi 0, %s14
    %p11 = scmp.ge.s32.totalorder %s10, 4
    %s20 = sphi 0, %s22
    %s23 = sphi 0, %s20
    %s24 = sphi 0, %s23
    %s40 = sphi 0, %s24
    %s44 = sphi 0, %s44
    %s46 = sphi 0, %s44
    %s47 = sphi 0, %s46
    %s61 = sphi 0, %s47
    %s65 = sphi 0, %s65
    %s67 = sphi 0, %s65
    %s68 = sphi 0, %s67
    %s82 = sphi 0, %s68
    %s86 = sphi 0, %s86
    %s88 = sphi 0, %s86
    %s89 = sphi 0, %s88
    %s103 = sphi 0, %s89
    %s109 = sphi 0, %s111
    %s112 = sphi 0, %s109
    %s113 = sphi 0, %s112
    %s129 = sphi 0, %s113
  $region4: #{tpu_custom_call.1} parent=0 // loop_header_branch
    %13 = sbr.rel (%p11) target = $region8
  $region5: #{tpu_custom_call.1} parent=0 // loop_body
    %s15 = ssub.s32 %s10, 1
    %s16 = ssub.s32 %s10, 2
    %s17 = sadd.s32 %s10, 1
    %s18 = ssub.s32 %s10, %s17
    %p19 = scmp.eq.s32.totalorder %s18, 0
    %s21 = sadd.s32 %s20, 1
    %s22 = scalar_select %p19, %s20, %s21
    %p25 = pneg %p19
    %p26 = scmp.eq.s32.totalorder %s10, 1
    %p27 = por %p25, %p26
    %p28 = scmp.ne.s32.totalorder %s20, %s23
    %p29 = scmp.eq.s32.totalorder %s10, 0
    %p30 = por %p28, %p29
    %p31 = scmp.ne.s32.totalorder %s20, %s23
    %p32 = scmp.eq.s32.totalorder %s15, 1
    %p33 = por %p31, %p32
    %p34 = scmp.ne.s32.totalorder %s23, %s24
    %p35 = scmp.eq.s32.totalorder %s15, 0
    %p36 = por %p34, %p35
    %p37 = scmp.ne.s32.totalorder %s23, %s24
    %p38 = scmp.eq.s32.totalorder %s16, 1
    %p39 = por %p37, %p38
    %p41 = scmp.ne.s32.totalorder %s24, %s40
    %p42 = scmp.eq.s32.totalorder %s16, 0
    %p43 = por %p41, %p42
    %s45 = sadd.s32 %s44, 1
    %p48 = scmp.eq.s32.totalorder %s10, 1
    %p49 = scmp.ne.s32.totalorder %s44, %s46
    %p50 = scmp.eq.s32.totalorder %s10, 0
    %p51 = por %p49, %p50
    %p52 = scmp.ne.s32.totalorder %s44, %s46
    %p53 = scmp.eq.s32.totalorder %s15, 1
    %p54 = por %p52, %p53
    %p55 = scmp.ne.s32.totalorder %s46, %s47
    %p56 = scmp.eq.s32.totalorder %s15, 0
    %p57 = por %p55, %p56
    %p58 = scmp.ne.s32.totalorder %s46, %s47
    %p59 = scmp.eq.s32.totalorder %s16, 1
    %p60 = por %p58, %p59
    %p62 = scmp.ne.s32.totalorder %s47, %s61
    %p63 = scmp.eq.s32.totalorder %s16, 0
    %p64 = por %p62, %p63
    %s66 = sadd.s32 %s65, 1
    %p69 = scmp.eq.s32.totalorder %s10, 1
    %p70 = scmp.ne.s32.totalorder %s65, %s67
    %p71 = scmp.eq.s32.totalorder %s10, 0
    %p72 = por %p70, %p71
    %p73 = scmp.ne.s32.totalorder %s65, %s67
    %p74 = scmp.eq.s32.totalorder %s15, 1
    %p75 = por %p73, %p74
    %p76 = scmp.ne.s32.totalorder %s67, %s68
    %p77 = scmp.eq.s32.totalorder %s15, 0
    %p78 = por %p76, %p77
    %p79 = scmp.ne.s32.totalorder %s67, %s68
    %p80 = scmp.eq.s32.totalorder %s16, 1
    %p81 = por %p79, %p80
    %p83 = scmp.ne.s32.totalorder %s68, %s82
    %p84 = scmp.eq.s32.totalorder %s16, 0
    %p85 = por %p83, %p84
    %s87 = sadd.s32 %s86, 1
    %p90 = scmp.eq.s32.totalorder %s10, 1
    %p91 = scmp.ne.s32.totalorder %s86, %s88
    %p92 = scmp.eq.s32.totalorder %s10, 0
    %p93 = por %p91, %p92
    %p94 = scmp.ne.s32.totalorder %s86, %s88
    %p95 = scmp.eq.s32.totalorder %s15, 1
    %p96 = por %p94, %p95
    %p97 = scmp.ne.s32.totalorder %s88, %s89
    %p98 = scmp.eq.s32.totalorder %s15, 0
    %p99 = por %p97, %p98
    %p100 = scmp.ne.s32.totalorder %s88, %s89
    %p101 = scmp.eq.s32.totalorder %s16, 1
    %p102 = por %p100, %p101
    %p104 = scmp.ne.s32.totalorder %s89, %s103
    %p105 = scmp.eq.s32.totalorder %s16, 0
    %p106 = por %p104, %p105
    %s107 = ssub.s32 %s10, %s17
    %p108 = scmp.eq.s32.totalorder %s107, 0
    %s110 = sadd.s32 %s109, 1
    %s111 = scalar_select %p108, %s109, %s110
    %p114 = pneg %p108
    %p115 = scmp.eq.s32.totalorder %s10, 1
    %p116 = por %p114, %p115
    %p117 = scmp.ne.s32.totalorder %s109, %s112
    %p118 = scmp.eq.s32.totalorder %s10, 0
    %p119 = por %p117, %p118
    %p120 = scmp.ne.s32.totalorder %s109, %s112
    %p121 = scmp.eq.s32.totalorder %s15, 1
    %p122 = por %p120, %p121
    %p123 = scmp.ne.s32.totalorder %s112, %s113
    %p124 = scmp.eq.s32.totalorder %s15, 0
    %p125 = por %p123, %p124
    %p126 = scmp.ne.s32.totalorder %s112, %s113
    %p127 = scmp.eq.s32.totalorder %s16, 1
    %p128 = por %p126, %p127
    %p130 = scmp.ne.s32.totalorder %s113, %s129
    %p131 = scmp.eq.s32.totalorder %s16, 0
    %p132 = por %p130, %p131
    %p133 = scmp.le.s32.totalorder 1, %s10
    %p134 = scmp.lt.s32.totalorder %s10, 3
    %p135 = pnand %p133, %p134
    %p136 = pneg %p135
    // Predicated region
    $region9: #{tpu_custom_call.1} parent=5 // pred_check
      _
    $region10: #{tpu_custom_call.1} parent=5 // pred_check_branch
      %138 = sbr.rel (%p135) target = $region12
    $region11: #{tpu_custom_call.1} parent=5 // pred_region
      %s139 = ssub.s32 %s10, 1
      // Predicated region
      $region13: #{tpu_custom_call.1} parent=11 // pred_check
        %p140 = pneg %p57
      $region14: #{tpu_custom_call.1} parent=11 // pred_check_branch
        %142 = sbr.rel (%p140) target = $region16
      $region15: #{tpu_custom_call.1} parent=11 // pred_region
        _
      $region16: #{tpu_custom_call.1} parent=11 // pred_fallthru
        _
      // Predicated region
      $region17: #{tpu_custom_call.1} parent=11 // pred_check
        %p143 = pneg %p78
      $region18: #{tpu_custom_call.1} parent=11 // pred_check_branch
        %145 = sbr.rel (%p143) target = $region20
      $region19: #{tpu_custom_call.1} parent=11 // pred_region
        _
      $region20: #{tpu_custom_call.1} parent=11 // pred_fallthru
        _
      // Predicated region
      $region21: #{tpu_custom_call.1} parent=11 // pred_check
        %p146 = pneg %p99
      $region22: #{tpu_custom_call.1} parent=11 // pred_check_branch
        %148 = sbr.rel (%p146) target = $region24
      $region23: #{tpu_custom_call.1} parent=11 // pred_region
        _
      $region24: #{tpu_custom_call.1} parent=11 // pred_fallthru
        _
    $region12: #{tpu_custom_call.1} parent=5 // pred_fallthru
      _
    %p149 = scmp.lt.s32.totalorder %s10, 2
    // Predicated region
    $region25: #{tpu_custom_call.1} parent=5 // pred_check
      %p150 = pneg %p149
    $region26: #{tpu_custom_call.1} parent=5 // pred_check_branch
      %152 = sbr.rel (%p150) target = $region28
    $region27: #{tpu_custom_call.1} parent=5 // pred_region
      // Predicated region
      $region29: #{tpu_custom_call.1} parent=27 // pred_check
        %p153 = pneg %p30
      $region30: #{tpu_custom_call.1} parent=27 // pred_check_branch
        %155 = sbr.rel (%p153) target = $region32
      $region31: #{tpu_custom_call.1} parent=27 // pred_region
        %p156 = scmp.lt.s32.totalorder %s10, 1
        %s157 = scalar_select %p156, %s10, 1
        %s158 = smul.addr %s157, 32
        %s159 = smul.addr %s158, 4
        %s160 = scalar_lea.vmem %s0, %s159
      $region32: #{tpu_custom_call.1} parent=27 // pred_fallthru
        _
    $region28: #{tpu_custom_call.1} parent=5 // pred_fallthru
      _
    %p161 = scmp.le.s32.totalorder 1, %s10
    %p162 = scmp.lt.s32.totalorder %s10, 3
    %p163 = pnand %p161, %p162
    %p164 = pneg %p163
    // Predicated region
    $region33: #{tpu_custom_call.1} parent=5 // pred_check
      _
    $region34: #{tpu_custom_call.1} parent=5 // pred_check_branch
      %166 = sbr.rel (%p163) target = $region36
    $region35: #{tpu_custom_call.1} parent=5 // pred_region
      %s167 = ssub.s32 %s10, 1
      %p168 = scmp.lt.s32.totalorder %s15, 1
      %s169 = scalar_select %p168, %s15, 1
      %s170 = smul.addr %s169, 32
      %s171 = smul.addr %s170, 4
      %s172 = scalar_lea.vmem %s0, %s171
      %p173 = pneg %p36
      %p174 = pneg %p33
      %p175 = pneg %p57
      %p176 = pneg %p54
      %p177 = pneg %p78
      %p178 = pneg %p75
      %p179 = pneg %p99
      %p180 = pneg %p96
      %p181 = pneg %p125
      %p182 = pneg %p122
      %p183 = scmp.lt.s32.totalorder %s15, 1
      %s184 = scalar_select %p183, %s15, 1
      %s185 = smul.addr %s184, 32
      %s186 = smul.addr %s185, 8
      %s187 = scalar_lea.vmem %s4, %s186
      %p188 = scmp.lt.s32.totalorder %s15, 1
      %s189 = scalar_select %p188, %s15, 1
      %s190 = smul.addr %s189, 32
      %s191 = smul.addr %s190, 4
      %s192 = scalar_lea.vmem %s0, %s191
      %p193 = scmp.lt.s32.totalorder %s15, 1
      %s194 = scalar_select %p193, %s15, 1
      %s195 = smul.addr %s194, 32
      %s196 = smul.addr %s195, 8
      %s197 = scalar_lea.vmem %s4, %s196
      %v199 = vld [vmem:[%s192] sm:$0xf]
      %v200 = vld [vmem:[%s192 + $0x4] sm:$0xf]
      %v201 = vld [vmem:[%s192 + $0x8] sm:$0xf]
      %v202 = vld [vmem:[%s192 + $0xc] sm:$0xf]
      %v203 = vld [vmem:[%s192 + $0x10] sm:$0xf]
      %v204 = vld [vmem:[%s192 + $0x14] sm:$0xf]
      %v205 = vld [vmem:[%s192 + $0x18] sm:$0xf]
      %v206 = vld [vmem:[%s192 + $0x1c] sm:$0xf]
      %v207 = vld [vmem:[%s192 + $0x20] sm:$0xf]
      %v208 = vld [vmem:[%s192 + $0x24] sm:$0xf]
      %v209 = vld [vmem:[%s192 + $0x28] sm:$0xf]
      %v210 = vld [vmem:[%s192 + $0x2c] sm:$0xf]
      %v211 = vld [vmem:[%s192 + $0x30] sm:$0xf]
      %v212 = vld [vmem:[%s192 + $0x34] sm:$0xf]
      %v213 = vld [vmem:[%s192 + $0x38] sm:$0xf]
      %v214 = vld [vmem:[%s192 + $0x3c] sm:$0xf]
      %v215 = vld [vmem:[%s192 + $0x40] sm:$0xf]
      %v216 = vld [vmem:[%s192 + $0x44] sm:$0xf]
      %v217 = vld [vmem:[%s192 + $0x48] sm:$0xf]
      %v218 = vld [vmem:[%s192 + $0x4c] sm:$0xf]
      %v219 = vld [vmem:[%s192 + $0x50] sm:$0xf]
      %v220 = vld [vmem:[%s192 + $0x54] sm:$0xf]
      %v221 = vld [vmem:[%s192 + $0x58] sm:$0xf]
      %v222 = vld [vmem:[%s192 + $0x5c] sm:$0xf]
      %v223 = vld [vmem:[%s192 + $0x60] sm:$0xf]
      %v224 = vld [vmem:[%s192 + $0x64] sm:$0xf]
      %v225 = vld [vmem:[%s192 + $0x68] sm:$0xf]
      %v226 = vld [vmem:[%s192 + $0x6c] sm:$0xf]
      %v227 = vld [vmem:[%s192 + $0x70] sm:$0xf]
      %v228 = vld [vmem:[%s192 + $0x74] sm:$0xf]
      %v229 = vld [vmem:[%s192 + $0x78] sm:$0xf]
      %v230 = vld [vmem:[%s192 + $0x7c] sm:$0xf]
      %v231 = vld [vmem:[%s1] sm:$0x3]
      %v264 = vunpack.c.l.b16 %v199
      %v265 = vunpack.c.l.b16 %v200
      %v266 = vunpack.c.l.b16 %v201
      %v267 = vunpack.c.l.b16 %v202
      %v268 = vunpack.c.l.b16 %v203
      %v269 = vunpack.c.l.b16 %v204
      %v270 = vunpack.c.l.b16 %v205
      %v271 = vunpack.c.l.b16 %v206
      %v272 = vunpack.c.l.b16 %v207
      %v273 = vunpack.c.l.b16 %v208
      %v274 = vunpack.c.l.b16 %v209
      %v275 = vunpack.c.l.b16 %v210
      %v276 = vunpack.c.l.b16 %v211
      %v277 = vunpack.c.l.b16 %v212
      %v278 = vunpack.c.l.b16 %v213
      %v279 = vunpack.c.l.b16 %v214
      %v280 = vunpack.c.l.b16 %v215
      %v281 = vunpack.c.l.b16 %v216
      %v282 = vunpack.c.l.b16 %v217
      %v283 = vunpack.c.l.b16 %v218
      %v284 = vunpack.c.l.b16 %v219
      %v285 = vunpack.c.l.b16 %v220
      %v286 = vunpack.c.l.b16 %v221
      %v287 = vunpack.c.l.b16 %v222
      %v288 = vunpack.c.l.b16 %v223
      %v289 = vunpack.c.l.b16 %v224
      %v290 = vunpack.c.l.b16 %v225
      %v291 = vunpack.c.l.b16 %v226
      %v292 = vunpack.c.l.b16 %v227
      %v293 = vunpack.c.l.b16 %v228
      %v294 = vunpack.c.l.b16 %v229
      %v295 = vunpack.c.l.b16 %v230
      %v296 = vpack.c.b16 %v265, %v264
      %v297 = vpack.c.b16 %v267, %v266
      %v298 = vpack.c.b16 %v269, %v268
      %v299 = vpack.c.b16 %v271, %v270
      %v300 = vpack.c.b16 %v273, %v272
      %v301 = vpack.c.b16 %v275, %v274
      %v302 = vpack.c.b16 %v277, %v276
      %v303 = vpack.c.b16 %v279, %v278
      %v304 = vpack.c.b16 %v281, %v280
      %v305 = vpack.c.b16 %v283, %v282
      %v306 = vpack.c.b16 %v285, %v284
      %v307 = vpack.c.b16 %v287, %v286
      %v308 = vpack.c.b16 %v289, %v288
      %v309 = vpack.c.b16 %v291, %v290
      %v310 = vpack.c.b16 %v293, %v292
      %v311 = vpack.c.b16 %v295, %v294
      %vm312 = vcmask 31744
      %v314 = vsel %vm312, %v296, 0
      %v317 = vsel %vm312, %v297, 0
      %v320 = vsel %vm312, %v298, 0
      %v323 = vsel %vm312, %v299, 0
      %v326 = vsel %vm312, %v300, 0
      %v329 = vsel %vm312, %v301, 0
      %v332 = vsel %vm312, %v302, 0
      %v335 = vsel %vm312, %v303, 0
      %v338 = vsel %vm312, %v304, 0
      %v341 = vsel %vm312, %v305, 0
      %v344 = vsel %vm312, %v306, 0
      %v347 = vsel %vm312, %v307, 0
      %v350 = vsel %vm312, %v308, 0
      %v353 = vsel %vm312, %v309, 0
      %v356 = vsel %vm312, %v310, 0
      %v359 = vsel %vm312, %v311, 0
      %vm361 = vcmask 1041408
      %v363 = vsel %vm361, %v231, 0
      %365 = vmatprep.subr.bf16.mxu0 0
      %366 = vmatpush1.bf16.msra.mxu0 %v363
      %367 = vmatprep.subr.bf16.mxu0 0
      %368 = vmatpush1.bf16.msra.mxu0 0
      %369 = vmatprep.subr.bf16.mxu0 0
      %370 = vmatpush1.bf16.msra.mxu0 0
      %371 = vmatprep.subr.bf16.mxu0 0
      %372 = vmatpush1.bf16.msra.mxu0 0
      %373 = vmatprep.subr.bf16.mxu0 0
      %374 = vmatpush1.bf16.msra.mxu0 0
      %375 = vmatprep.subr.bf16.mxu0 0
      %376 = vmatpush1.bf16.msra.mxu0 0
      %377 = vmatprep.subr.bf16.mxu0 0
      %378 = vmatpush1.bf16.msra.mxu0 0
      %379 = vmatprep.subr.bf16.mxu0 0
      %380 = vmatpush1.bf16.msra.mxu0 0
      %381 = vmatprep.subr.bf16.mxu0 0
      %382 = vmatpush1.bf16.msra.mxu0 0
      %383 = vmatprep.subr.bf16.mxu0 0
      %384 = vmatpush1.bf16.msra.mxu0 0
      %385 = vmatprep.subr.bf16.mxu0 0
      %386 = vmatpush1.bf16.msra.mxu0 0
      %387 = vmatprep.subr.bf16.mxu0 0
      %388 = vmatpush1.bf16.msra.mxu0 0
      %389 = vmatprep.subr.bf16.mxu0 0
      %390 = vmatpush1.bf16.msra.mxu0 0
      %391 = vmatprep.subr.bf16.mxu0 0
      %392 = vmatpush1.bf16.msra.mxu0 0
      %393 = vmatprep.subr.bf16.mxu0 0
      %394 = vmatpush1.bf16.msra.mxu0 0
      %395 = vmatprep.subr.bf16.mxu0 0
      %396 = vmatpush1.bf16.msra.mxu0 0
      %397 = vmatprep.mubr.bf16.mxu0 0
      %398 = vmatmul.mubr.bf16.gmra.mrb[0].mxu0 %v314
      %v399 = vpop.f32.mrb[0].mxu0
      %v400 = vadd.f32 0.0, %v399
      %v401 = vpop.f32.mrb[0].mxu0
      %v402 = vpop.f32.mrb[0].mxu0
      %v403 = vadd.f32 0.0, %v402
      %v404 = vpop.f32.mrb[0].mxu0
      %405 = vmatprep.mubr.bf16.mxu0 0
      %406 = vmatmul.mubr.bf16.gmra.mrb[0].mxu0 %v317
      %v407 = vpop.f32.mrb[0].mxu0
      %v408 = vadd.f32 0.0, %v407
      %v409 = vpop.f32.mrb[0].mxu0
      %v410 = vpop.f32.mrb[0].mxu0
      %v411 = vadd.f32 0.0, %v410
      %v412 = vpop.f32.mrb[0].mxu0
      %413 = vmatprep.mubr.bf16.mxu0 0
      %414 = vmatmul.mubr.bf16.gmra.mrb[0].mxu0 %v320
      %v415 = vpop.f32.mrb[0].mxu0
      %v416 = vadd.f32 0.0, %v415
      %v417 = vpop.f32.mrb[0].mxu0
      %v418 = vpop.f32.mrb[0].mxu0
      %v419 = vadd.f32 0.0, %v418
      %v420 = vpop.f32.mrb[0].mxu0
      %421 = vmatprep.mubr.bf16.mxu0 0
      %422 = vmatmul.mubr.bf16.gmra.mrb[0].mxu0 %v323
      %v423 = vpop.f32.mrb[0].mxu0
      %v424 = vadd.f32 0.0, %v423
      %v425 = vpop.f32.mrb[0].mxu0
      %v426 = vpop.f32.mrb[0].mxu0
      %v427 = vadd.f32 0.0, %v426
      %v428 = vpop.f32.mrb[0].mxu0
      %429 = vmatprep.mubr.bf16.mxu0 0
      %430 = vmatmul.mubr.bf16.gmra.mrb[0].mxu0 %v326
      %v431 = vpop.f32.mrb[0].mxu0
      %v432 = vadd.f32 0.0, %v431
      %v433 = vpop.f32.mrb[0].mxu0
      %v434 = vpop.f32.mrb[0].mxu0
      %v435 = vadd.f32 0.0, %v434
      %v436 = vpop.f32.mrb[0].mxu0
      %437 = vmatprep.mubr.bf16.mxu0 0
      %438 = vmatmul.mubr.bf16.gmra.mrb[0].mxu0 %v329
      %v439 = vpop.f32.mrb[0].mxu0
      %v440 = vadd.f32 0.0, %v439
      %v441 = vpop.f32.mrb[0].mxu0
      %v442 = vpop.f32.mrb[0].mxu0
      %v443 = vadd.f32 0.0, %v442
      %v444 = vpop.f32.mrb[0].mxu0
      %445 = vmatprep.mubr.bf16.mxu0 0
      %446 = vmatmul.mubr.bf16.gmra.mrb[0].mxu0 %v332
      %v447 = vpop.f32.mrb[0].mxu0
      %v448 = vadd.f32 0.0, %v447
      %v449 = vpop.f32.mrb[0].mxu0
      %v450 = vpop.f32.mrb[0].mxu0
      %v451 = vadd.f32 0.0, %v450
      %v452 = vpop.f32.mrb[0].mxu0
      %453 = vmatprep.mubr.bf16.mxu0 0
      %454 = vmatmul.mubr.bf16.gmra.mrb[0].mxu0 %v335
      %v455 = vpop.f32.mrb[0].mxu0
      %v456 = vadd.f32 0.0, %v455
      %v457 = vpop.f32.mrb[0].mxu0
      %v458 = vpop.f32.mrb[0].mxu0
      %v459 = vadd.f32 0.0, %v458
      %v460 = vpop.f32.mrb[0].mxu0
      %461 = vmatprep.mubr.bf16.mxu0 0
      %462 = vmatmul.mubr.bf16.gmra.mrb[0].mxu0 %v338
      %v463 = vpop.f32.mrb[0].mxu0
      %v464 = vadd.f32 0.0, %v463
      %v465 = vpop.f32.mrb[0].mxu0
      %v466 = vpop.f32.mrb[0].mxu0
      %v467 = vadd.f32 0.0, %v466
      %v468 = vpop.f32.mrb[0].mxu0
      %469 = vmatprep.mubr.bf16.mxu0 0
      %470 = vmatmul.mubr.bf16.gmra.mrb[0].mxu0 %v341
      %v471 = vpop.f32.mrb[0].mxu0
      %v472 = vadd.f32 0.0, %v471
      %v473 = vpop.f32.mrb[0].mxu0
      %v474 = vpop.f32.mrb[0].mxu0
      %v475 = vadd.f32 0.0, %v474
      %v476 = vpop.f32.mrb[0].mxu0
      %477 = vmatprep.mubr.bf16.mxu0 0
      %478 = vmatmul.mubr.bf16.gmra.mrb[0].mxu0 %v344
      %v479 = vpop.f32.mrb[0].mxu0
      %v480 = vadd.f32 0.0, %v479
      %v481 = vpop.f32.mrb[0].mxu0
      %v482 = vpop.f32.mrb[0].mxu0
      %v483 = vadd.f32 0.0, %v482
      %v484 = vpop.f32.mrb[0].mxu0
      %485 = vmatprep.mubr.bf16.mxu0 0
      %486 = vmatmul.mubr.bf16.gmra.mrb[0].mxu0 %v347
      %v487 = vpop.f32.mrb[0].mxu0
      %v488 = vadd.f32 0.0, %v487
      %v489 = vpop.f32.mrb[0].mxu0
      %v490 = vpop.f32.mrb[0].mxu0
      %v491 = vadd.f32 0.0, %v490
      %v492 = vpop.f32.mrb[0].mxu0
      %493 = vmatprep.mubr.bf16.mxu0 0
      %494 = vmatmul.mubr.bf16.gmra.mrb[0].mxu0 %v350
      %v495 = vpop.f32.mrb[0].mxu0
      %v496 = vadd.f32 0.0, %v495
      %v497 = vpop.f32.mrb[0].mxu0
      %v498 = vpop.f32.mrb[0].mxu0
      %v499 = vadd.f32 0.0, %v498
      %v500 = vpop.f32.mrb[0].mxu0
      %501 = vmatprep.mubr.bf16.mxu0 0
      %502 = vmatmul.mubr.bf16.gmra.mrb[0].mxu0 %v353
      %v503 = vpop.f32.mrb[0].mxu0
      %v504 = vadd.f32 0.0, %v503
      %v505 = vpop.f32.mrb[0].mxu0
      %v506 = vpop.f32.mrb[0].mxu0
      %v507 = vadd.f32 0.0, %v506
      %v508 = vpop.f32.mrb[0].mxu0
      %509 = vmatprep.mubr.bf16.mxu0 0
      %510 = vmatmul.mubr.bf16.gmra.mrb[0].mxu0 %v356
      %v511 = vpop.f32.mrb[0].mxu0
      %v512 = vadd.f32 0.0, %v511
      %v513 = vpop.f32.mrb[0].mxu0
      %v514 = vpop.f32.mrb[0].mxu0
      %v515 = vadd.f32 0.0, %v514
      %v516 = vpop.f32.mrb[0].mxu0
      %517 = vmatprep.mubr.bf16.mxu0 0
      %518 = vmatmul.mubr.bf16.gmra.mrb[0].mxu0 %v359
      %v519 = vpop.f32.mrb[0].mxu0
      %v520 = vadd.f32 0.0, %v519
      %v521 = vpop.f32.mrb[0].mxu0
      %v522 = vpop.f32.mrb[0].mxu0
      %v523 = vadd.f32 0.0, %v522
      %v524 = vpop.f32.mrb[0].mxu0
      %525 = vdwg.mxu0
      %v526 = vld [vmem:[%s2] sm:$0x1]
      %v528 = vlaneseq
      %v529 = vshrl.u32 %v528, 7
      %v530 = vsub.s32 0, %v529
      %v531 = vrot.slane %v526, %v530
      %v533 = vmul.f32 %v400, %v531
      %v534 = vmul.f32 %v403, %v531
      %v535 = vmul.f32 %v408, %v531
      %v536 = vmul.f32 %v411, %v531
      %v537 = vmul.f32 %v416, %v531
      %v538 = vmul.f32 %v419, %v531
      %v539 = vmul.f32 %v424, %v531
      %v540 = vmul.f32 %v427, %v531
      %v541 = vmul.f32 %v432, %v531
      %v542 = vmul.f32 %v435, %v531
      %v543 = vmul.f32 %v440, %v531
      %v544 = vmul.f32 %v443, %v531
      %v545 = vmul.f32 %v448, %v531
      %v546 = vmul.f32 %v451, %v531
      %v547 = vmul.f32 %v456, %v531
      %v548 = vmul.f32 %v459, %v531
      %v549 = vmul.f32 %v464, %v531
      %v550 = vmul.f32 %v467, %v531
      %v551 = vmul.f32 %v472, %v531
      %v552 = vmul.f32 %v475, %v531
      %v553 = vmul.f32 %v480, %v531
      %v554 = vmul.f32 %v483, %v531
      %v555 = vmul.f32 %v488, %v531
      %v556 = vmul.f32 %v491, %v531
      %v557 = vmul.f32 %v496, %v531
      %v558 = vmul.f32 %v499, %v531
      %v559 = vmul.f32 %v504, %v531
      %v560 = vmul.f32 %v507, %v531
      %v561 = vmul.f32 %v512, %v531
      %v562 = vmul.f32 %v515, %v531
      %v563 = vmul.f32 %v520, %v531
      %v564 = vmul.f32 %v523, %v531
      %v565 = vld [vmem:[%s3] sm:$0x1]
      %v567 = vlaneseq
      %v568 = vshrl.u32 %v567, 7
      %v569 = vsub.s32 0, %v568
      %v570 = vrot.slane %v565, %v569
      %v572 = vadd.f32 %v533, %v570
      %v573 = vadd.f32 %v534, %v570
      %v574 = vadd.f32 %v535, %v570
      %v575 = vadd.f32 %v536, %v570
      %v576 = vadd.f32 %v537, %v570
      %v577 = vadd.f32 %v538, %v570
      %v578 = vadd.f32 %v539, %v570
      %v579 = vadd.f32 %v540, %v570
      %v580 = vadd.f32 %v541, %v570
      %v581 = vadd.f32 %v542, %v570
      %v582 = vadd.f32 %v543, %v570
      %v583 = vadd.f32 %v544, %v570
      %v584 = vadd.f32 %v545, %v570
      %v585 = vadd.f32 %v546, %v570
      %v586 = vadd.f32 %v547, %v570
      %v587 = vadd.f32 %v548, %v570
      %v588 = vadd.f32 %v549, %v570
      %v589 = vadd.f32 %v550, %v570
      %v590 = vadd.f32 %v551, %v570
      %v591 = vadd.f32 %v552, %v570
      %v592 = vadd.f32 %v553, %v570
      %v593 = vadd.f32 %v554, %v570
      %v594 = vadd.f32 %v555, %v570
      %v595 = vadd.f32 %v556, %v570
      %v596 = vadd.f32 %v557, %v570
      %v597 = vadd.f32 %v558, %v570
      %v598 = vadd.f32 %v559, %v570
      %v599 = vadd.f32 %v560, %v570
      %v600 = vadd.f32 %v561, %v570
      %v601 = vadd.f32 %v562, %v570
      %v602 = vadd.f32 %v563, %v570
      %v603 = vadd.f32 %v564, %v570
      %v604 = vmax.f32 %v572, 0.0
      %v605 = vmax.f32 %v573, 0.0
      %v606 = vmax.f32 %v574, 0.0
      %v607 = vmax.f32 %v575, 0.0
      %v608 = vmax.f32 %v576, 0.0
      %v609 = vmax.f32 %v577, 0.0
      %v610 = vmax.f32 %v578, 0.0
      %v611 = vmax.f32 %v579, 0.0
      %v612 = vmax.f32 %v580, 0.0
      %v613 = vmax.f32 %v581, 0.0
      %v614 = vmax.f32 %v582, 0.0
      %v615 = vmax.f32 %v583, 0.0
      %v616 = vmax.f32 %v584, 0.0
      %v617 = vmax.f32 %v585, 0.0
      %v618 = vmax.f32 %v586, 0.0
      %v619 = vmax.f32 %v587, 0.0
      %v620 = vmax.f32 %v588, 0.0
      %v621 = vmax.f32 %v589, 0.0
      %v622 = vmax.f32 %v590, 0.0
      %v623 = vmax.f32 %v591, 0.0
      %v624 = vmax.f32 %v592, 0.0
      %v625 = vmax.f32 %v593, 0.0
      %v626 = vmax.f32 %v594, 0.0
      %v627 = vmax.f32 %v595, 0.0
      %v628 = vmax.f32 %v596, 0.0
      %v629 = vmax.f32 %v597, 0.0
      %v630 = vmax.f32 %v598, 0.0
      %v631 = vmax.f32 %v599, 0.0
      %v632 = vmax.f32 %v600, 0.0
      %v633 = vmax.f32 %v601, 0.0
      %v634 = vmax.f32 %v602, 0.0
      %v635 = vmax.f32 %v603, 0.0
      %vm636 = vcmask 523264
      %637 = vst.msk [vmem:[%s197] sm:$0xff] %vm636, %v604
      %638 = vst.msk [vmem:[%s197 + $0x8] sm:$0xff] %vm636, %v605
      %639 = vst.msk [vmem:[%s197 + $0x10] sm:$0xff] %vm636, %v606
      %640 = vst.msk [vmem:[%s197 + $0x18] sm:$0xff] %vm636, %v607
      %641 = vst.msk [vmem:[%s197 + $0x20] sm:$0xff] %vm636, %v608
      %642 = vst.msk [vmem:[%s197 + $0x28] sm:$0xff] %vm636, %v609
      %643 = vst.msk [vmem:[%s197 + $0x30] sm:$0xff] %vm636, %v610
      %644 = vst.msk [vmem:[%s197 + $0x38] sm:$0xff] %vm636, %v611
      %645 = vst.msk [vmem:[%s197 + $0x40] sm:$0xff] %vm636, %v612
      %646 = vst.msk [vmem:[%s197 + $0x48] sm:$0xff] %vm636, %v613
      %647 = vst.msk [vmem:[%s197 + $0x50] sm:$0xff] %vm636, %v614
      %648 = vst.msk [vmem:[%s197 + $0x58] sm:$0xff] %vm636, %v615
      %649 = vst.msk [vmem:[%s197 + $0x60] sm:$0xff] %vm636, %v616
      %650 = vst.msk [vmem:[%s197 + $0x68] sm:$0xff] %vm636, %v617
      %651 = vst.msk [vmem:[%s197 + $0x70] sm:$0xff] %vm636, %v618
      %652 = vst.msk [vmem:[%s197 + $0x78] sm:$0xff] %vm636, %v619
      %653 = vst.msk [vmem:[%s197 + $0x80] sm:$0xff] %vm636, %v620
      %654 = vst.msk [vmem:[%s197 + $0x88] sm:$0xff] %vm636, %v621
      %655 = vst.msk [vmem:[%s197 + $0x90] sm:$0xff] %vm636, %v622
      %656 = vst.msk [vmem:[%s197 + $0x98] sm:$0xff] %vm636, %v623
      %657 = vst.msk [vmem:[%s197 + $0xa0] sm:$0xff] %vm636, %v624
      %658 = vst.msk [vmem:[%s197 + $0xa8] sm:$0xff] %vm636, %v625
      %659 = vst.msk [vmem:[%s197 + $0xb0] sm:$0xff] %vm636, %v626
      %660 = vst.msk [vmem:[%s197 + $0xb8] sm:$0xff] %vm636, %v627
      %661 = vst.msk [vmem:[%s197 + $0xc0] sm:$0xff] %vm636, %v628
      %662 = vst.msk [vmem:[%s197 + $0xc8] sm:$0xff] %vm636, %v629
      %663 = vst.msk [vmem:[%s197 + $0xd0] sm:$0xff] %vm636, %v630
      %664 = vst.msk [vmem:[%s197 + $0xd8] sm:$0xff] %vm636, %v631
      %665 = vst.msk [vmem:[%s197 + $0xe0] sm:$0xff] %vm636, %v632
      %666 = vst.msk [vmem:[%s197 + $0xe8] sm:$0xff] %vm636, %v633
      %667 = vst.msk [vmem:[%s197 + $0xf0] sm:$0xff] %vm636, %v634
      %668 = vst.msk [vmem:[%s197 + $0xf8] sm:$0xff] %vm636, %v635
      %p669 = scmp.lt.s32.totalorder %s15, 1
      %s670 = scalar_select %p669, %s15, 1
      %s671 = smul.addr %s670, 32
      %s672 = smul.addr %s671, 8
      %s673 = scalar_lea.vmem %s4, %s672
      // Predicated region
      $region37: #{tpu_custom_call.1} parent=35 // pred_check
        %p674 = pneg %p122
      $region38: #{tpu_custom_call.1} parent=35 // pred_check_branch
        %676 = sbr.rel (%p674) target = $region40
      $region39: #{tpu_custom_call.1} parent=35 // pred_region
        _
      $region40: #{tpu_custom_call.1} parent=35 // pred_fallthru
        _
    $region36: #{tpu_custom_call.1} parent=5 // pred_fallthru
      _
    %p677 = scmp.le.s32.totalorder 2, %s10
    // Predicated region
    $region41: #{tpu_custom_call.1} parent=5 // pred_check
      %p678 = pneg %p677
    $region42: #{tpu_custom_call.1} parent=5 // pred_check_branch
      %680 = sbr.rel (%p678) target = $region44
    $region43: #{tpu_custom_call.1} parent=5 // pred_region
      %s681 = ssub.s32 %s10, 2
      // Predicated region
      $region45: #{tpu_custom_call.1} parent=43 // pred_check
        %p682 = pneg %p128
      $region46: #{tpu_custom_call.1} parent=43 // pred_check_branch
        %684 = sbr.rel (%p682) target = $region48
      $region47: #{tpu_custom_call.1} parent=43 // pred_region
        %p685 = scmp.lt.s32.totalorder %s16, 1
        %s686 = scalar_select %p685, %s16, 1
        %s687 = smul.addr %s686, 32
        %s688 = smul.addr %s687, 8
        %s689 = scalar_lea.vmem %s4, %s688
      $region48: #{tpu_custom_call.1} parent=43 // pred_fallthru
        _
    $region44: #{tpu_custom_call.1} parent=5 // pred_fallthru
      _
  $region6: #{tpu_custom_call.1} parent=0 // loop_footer
    %s14 = sadd.s32 1, %s10
  $region7: #{tpu_custom_call.1} parent=0 // loop_footer_branch
    %9 = sbr.rel target = $region3
  $region8: #{tpu_custom_call.1} parent=0 // loop_exit
    _

</llo_original>
